<compile_context>
chip_gen: v7x
topology: tpu7x:2x2x1
jax: 0.10.0
libtpu: 0.0.40
codegen_flags: <defaults>
</compile_context>

<pallas_src>
import functools

import jax
import jax.numpy as jnp
from jax.experimental import pallas as pl
from jax.experimental.pallas import tpu as pltpu


_LANE_CANDIDATES = (4096, 2048, 1024, 512, 256, 128)
_SMALL_N = 1 << 16          # below this, a fused XLA elementwise op is faster
_MAX_BLOCK_ELEMS = 1 << 20  # ~4 MiB f32 per I/O tile; bounds in-kernel f32 set


def _rescaled_sigmoid_kernel(x_ref, o_ref, *, lower, upper, eps):
    # Upcast once so the transcendental + clip chain stays on the f32 path
    # (v5e has no bf16 VPU/EUP path).
    x = x_ref[...].astype(jnp.float32)
    # sigmoid(x) == 0.5 * tanh(0.5 * x) + 0.5   (one EUP op + one FMA)
    y = 0.5 * jnp.tanh(0.5 * x) + 0.5
    y = (upper - lower) * y + lower
    # LowerBound.apply(y, lower + eps)        -> max
    y = jnp.maximum(y, lower + eps)
    # -LowerBound.apply(-y, -upper + eps)     -> min(y, upper - eps)
    y = jnp.minimum(y, upper - eps)
    o_ref[...] = y.astype(o_ref.dtype)


def _round_up(x, m):
    return (x + m - 1) // m * m


def rescaled_sigmoid(x, lower, upper, eps=1e-05):
    """Pallas TPU implementation of RescaledSigmoid.forward (elementwise)."""
    orig_shape = x.shape
    orig_dtype = x.dtype
    n = x.size
    lower = float(lower)   # scalar bounds (as in the PyTorch module ctor)
    upper = float(upper)
    eps = float(eps)

    if n == 0:
        return x

    if n < _SMALL_N:
        # Tiny tensors: pallas_call launch + reshape machinery costs more than
        # the whole op; let XLA fuse it.
        y = (upper - lower) * jax.nn.sigmoid(x) + lower
        return jnp.clip(y, lower + eps, upper - eps).astype(orig_dtype)

    flat = x.reshape(-1)

    # ---- lane-dense slab: last dim a multiple of 128, padding only if forced
    lanes = None
    for cand in _LANE_CANDIDATES:
        if n % cand == 0:
            lanes = cand
            break
    if lanes is None:
        # Rare odd sizes: minimal pad to a multiple of 128 (one extra copy).
        lanes = 128
        pad = _round_up(n, lanes) - n
        flat = jnp.pad(flat, (0, pad))
    else:
        pad = 0
    total = n + pad
    rows = total // lanes
    x2d = flat.reshape(rows, lanes)

    # ---- dtype-aware block_rows selection
    itemsize = jnp.dtype(orig_dtype).itemsize
    gran = max(8, 32 // itemsize)          # sublane packing: f32=8, bf16=16, 8-bit=32

    cap_rows = max(gran, (_MAX_BLOCK_ELEMS // lanes) // gran * gran)
    # Aim for >=4 grid steps so the BlockSpec pipeline actually overlaps
    # prefetch/compute/writeback (and v7x's two TCs both get work).
    rows_for_4_steps = _round_up(pl.cdiv(rows, 4), gran)
    block_rows = max(gran, min(cap_rows, rows_for_4_steps))
    if block_rows >= rows:
        block_rows = rows                  # full-dim block is always legal

    grid = (pl.cdiv(rows, block_rows),)    # ragged last block handled by Pallas

    kernel = functools.partial(
        _rescaled_sigmoid_kernel, lower=lower, upper=upper, eps=eps
    )

    out2d = pl.pallas_call(
        kernel,
        out_shape=jax.ShapeDtypeStruct((rows, lanes), orig_dtype),
        grid_spec=pl.GridSpec(
            grid=grid,
            in_specs=[pl.BlockSpec((block_rows, lanes), lambda i: (i, 0))],
            out_specs=pl.BlockSpec((block_rows, lanes), lambda i: (i, 0)),
        ),
        compiler_params=pltpu.CompilerParams(
            # Independent tiles -> shard the 1-D grid across TCs on v7x;
            # neutral on single-TC v5e/v6e.
            dimension_semantics=("parallel",),
            # Ceiling check only; actual usage (<= ~16 MiB double-buffered I/O
            # + f32 temporaries) stays well under every generation's VMEM.
            vmem_limit_bytes=64 * 1024 * 1024,
        ),
    )(x2d)

    out_flat = out2d.reshape(-1)
    if pad:
        out_flat = out_flat[:n]
    return out_flat.reshape(orig_shape)


if __name__ == "__main__":
    # Deterministic "module parameters" (RescaledSigmoid(lower, upper)).
    lower = 0.0
    upper = 1.0
    eps = 1e-05

    def ref_fn(x):
        # Reference in plain JAX (same math as the PyTorch forward).
        y = (upper - lower) * (1.0 / (1.0 + jnp.exp(-x.astype(jnp.float32)))) + lower
        return jnp.clip(y, lower + eps, upper - eps).astype(x.dtype)

    key = jax.random.PRNGKey(0)
    k1, k2, k3, k4 = jax.random.split(key, 4)

    cases = {
        # Module-sized demo input (NCHW) -> small-input fused-XLA path.
        "small_fallback": jax.random.normal(k1, (2, 4, 16, 16), jnp.float32) * 3.0,
        # Pallas path, rows divide evenly into blocks (multi-step pipeline).
        "pallas_even": jax.random.normal(k2, (4, 4, 64, 128), jnp.float32) * 3.0,
        # Pallas path with a ragged (masked) final row block.
        "pallas_ragged": jax.random.normal(k3, (4, 4, 80, 128), jnp.float32) * 3.0,
        # Pallas path where n is not a multiple of 128 (rare pad+slice path).
        "pallas_padded": jax.random.normal(k4, (1, 1, 257, 300), jnp.float32) * 3.0,
    }

    for name, x in cases.items():
        out = jax.block_until_ready(rescaled_sigmoid(x, lower, upper, eps))
        assert out.shape == x.shape and out.dtype == x.dtype, name
        assert jnp.allclose(out, ref_fn(x), atol=2e-6, rtol=2e-6), name

    print("KERNEL_OK")
</pallas_src>

<mosaic_0001>
module attributes {stable_mosaic.version = 11 : i64} {
  func.func @_rescaled_sigmoid_kernel(%arg0: i32, %arg1: memref<8x4096xf32, #tpu.memory_space<vmem>>, %arg2: memref<8x4096xf32, #tpu.memory_space<vmem>>) attributes {dimension_semantics = [#tpu.dimension_semantics<parallel>], iteration_bounds = array<i64: 4>, scalar_prefetch = 0 : i64, scratch_operands = 0 : i64, tpu.core_type = #tpu.core_type<tc>, window_params = [{transform_indices = @transform_0, window_bounds = array<i64: 8, 4096>}, {transform_indices = @transform_1, window_bounds = array<i64: 8, 4096>}]} {
    %c0 = arith.constant 0 : index
    %c0_0 = arith.constant 0 : index
    %0 = vector.load %arg1[%c0, %c0_0] : memref<8x4096xf32, #tpu.memory_space<vmem>>, vector<8x4096xf32>
    %cst = arith.constant 5.000000e-01 : f32
    %1 = vector.broadcast %cst : f32 to vector<8x4096xf32>
    %2 = arith.mulf %1, %0 : vector<8x4096xf32>
    %3 = math.tanh %2 : vector<8x4096xf32>
    %cst_1 = arith.constant 5.000000e-01 : f32
    %4 = vector.broadcast %cst_1 : f32 to vector<8x4096xf32>
    %5 = arith.mulf %4, %3 : vector<8x4096xf32>
    %cst_2 = arith.constant 5.000000e-01 : f32
    %6 = vector.broadcast %cst_2 : f32 to vector<8x4096xf32>
    %7 = arith.addf %5, %6 : vector<8x4096xf32>
    %cst_3 = arith.constant 1.000000e+00 : f32
    %8 = vector.broadcast %cst_3 : f32 to vector<8x4096xf32>
    %9 = arith.mulf %8, %7 : vector<8x4096xf32>
    %cst_4 = arith.constant 0.000000e+00 : f32
    %10 = vector.broadcast %cst_4 : f32 to vector<8x4096xf32>
    %11 = arith.addf %9, %10 : vector<8x4096xf32>
    %cst_5 = arith.constant 9.99999974E-6 : f32
    %12 = vector.broadcast %cst_5 : f32 to vector<8x4096xf32>
    %13 = arith.maximumf %11, %12 : vector<8x4096xf32>
    %cst_6 = arith.constant 0.999989986 : f32
    %14 = vector.broadcast %cst_6 : f32 to vector<8x4096xf32>
    %15 = arith.minimumf %13, %14 : vector<8x4096xf32>
    %c0_7 = arith.constant 0 : index
    %c0_8 = arith.constant 0 : index
    %16 = vector.load %arg2[%c0_7, %c0_8] : memref<8x4096xf32, #tpu.memory_space<vmem>>, vector<8x4096xf32>
    tpu.vector_store %arg2[%c0_7, %c0_8], %15 {strides = array<i32>} : memref<8x4096xf32, #tpu.memory_space<vmem>>, vector<8x4096xf32>,
    return
  }
  func.func @transform_0(%arg0: i32) -> (i32, i32) {
    %c0_i32 = arith.constant 0 : i32
    %c0_i32_0 = arith.constant 0 : i32
    return %arg0, %c0_i32 : i32, i32
  }
  func.func @transform_1(%arg0: i32) -> (i32, i32) {
    %c0_i32 = arith.constant 0 : i32
    %c0_i32_0 = arith.constant 0 : i32
    return %arg0, %c0_i32 : i32, i32
  }
}

</mosaic_0001>

<llo_original>
// kernel: tpu_custom_call.1
$region0: #{tpu_custom_call.1}
  #allocation0 [shape = 'u32[]', space=smem, size = 0x4, offset = 0x4, fixed_abs, tag = 'smem constant byte address 0x4 - core index']
  #allocation1 [shape = 'u32[144,128]{1,0:T(1,128)}', space=vmem, size = 0x12000, scoped, tag = 'internal scratch']
  %s0 = inlined_call_operand.hbm [shape: f32[32,4096], index: 0, kind: input, shape index: {}]
  %s1 = inlined_call_operand.hbm [shape: f32[32,4096], index: 1, kind: output, shape index: {}]
  %s2 = sld [smem:[#allocation0]]
  $region41: #{tpu_custom_call.1} parent=0
    _
  %s4 = ssub.s32 1, %s2
  %s5 = scalar_select 0, %s4, %s2
  $region1: #{tpu_custom_call.1} parent=0
    #allocation2 [shape = 'u8[262144]{0}', space=vmem, size = 0x40000, scoped, tag = 'input window, operand 0']
    #allocation3 [shape = 's32[2]{0}', space=sflag, size = 0x8, scoped, tag = 'scoped memory for tpu_custom_call.1']
    #allocation4 [shape = 's32[2]{0}', space=sflag, size = 0x8, scoped, tag = 'scoped memory for tpu_custom_call.1']
    #allocation5 [shape = 'u8[262144]{0}', space=vmem, size = 0x40000, scoped, tag = 'output window, operand 0']
    %6 = vsyncpa [#allocation3], 0
    %s7 = scalar_lea.sflag [#allocation3], 1
    %8 = vsyncpa %s7, 0
    %9 = vsyncpa [#allocation4], 0
    %s10 = scalar_lea.sflag [#allocation4], 1
    %11 = vsyncpa %s10, 0
    loop: start=0, step=1, limit=6
    $region2: #{tpu_custom_call.1} parent=1 // loop_pre_header
      _
    $region3: #{tpu_custom_call.1} parent=1 // loop_header
      %s13 = sphi 0, %s17
      %p14 = scmp.ge.s32.totalorder %s13, 6
      %s23 = sphi 0, %s25
      %s26 = sphi 0, %s23
      %s27 = sphi 0, %s26
      %s43 = sphi 0, %s27
      %s49 = sphi 0, %s51
      %s52 = sphi 0, %s49
      %s53 = sphi 0, %s52
      %s69 = sphi 0, %s53
    $region4: #{tpu_custom_call.1} parent=1 // loop_header_branch
      %16 = sbr.rel (%p14) target = $region8
    $region5: #{tpu_custom_call.1} parent=1 // loop_body
      %s18 = ssub.s32 %s13, 1
      %s19 = ssub.s32 %s13, 2
      %s20 = sadd.s32 %s13, 1
      %s21 = ssub.s32 %s13, %s20
      %p22 = scmp.eq.s32.totalorder %s21, 0
      %s24 = sadd.s32 %s23, 1
      %s25 = scalar_select %p22, %s23, %s24
      %p28 = pneg %p22
      %p29 = scmp.eq.s32.totalorder %s13, 3
      %p30 = por %p28, %p29
      %p31 = scmp.ne.s32.totalorder %s23, %s26
      %p32 = scmp.eq.s32.totalorder %s13, 0
      %p33 = por %p31, %p32
      %p34 = scmp.ne.s32.totalorder %s23, %s26
      %p35 = scmp.eq.s32.totalorder %s18, 3
      %p36 = por %p34, %p35
      %p37 = scmp.ne.s32.totalorder %s26, %s27
      %p38 = scmp.eq.s32.totalorder %s18, 0
      %p39 = por %p37, %p38
      %p40 = scmp.ne.s32.totalorder %s26, %s27
      %p41 = scmp.eq.s32.totalorder %s19, 3
      %p42 = por %p40, %p41
      %p44 = scmp.ne.s32.totalorder %s27, %s43
      %p45 = scmp.eq.s32.totalorder %s19, 0
      %p46 = por %p44, %p45
      %s47 = ssub.s32 %s13, %s20
      %p48 = scmp.eq.s32.totalorder %s47, 0
      %s50 = sadd.s32 %s49, 1
      %s51 = scalar_select %p48, %s49, %s50
      %p54 = pneg %p48
      %p55 = scmp.eq.s32.totalorder %s13, 3
      %p56 = por %p54, %p55
      %p57 = scmp.ne.s32.totalorder %s49, %s52
      %p58 = scmp.eq.s32.totalorder %s13, 0
      %p59 = por %p57, %p58
      %p60 = scmp.ne.s32.totalorder %s49, %s52
      %p61 = scmp.eq.s32.totalorder %s18, 3
      %p62 = por %p60, %p61
      %p63 = scmp.ne.s32.totalorder %s52, %s53
      %p64 = scmp.eq.s32.totalorder %s18, 0
      %p65 = por %p63, %p64
      %p66 = scmp.ne.s32.totalorder %s52, %s53
      %p67 = scmp.eq.s32.totalorder %s19, 3
      %p68 = por %p66, %p67
      %p70 = scmp.ne.s32.totalorder %s53, %s69
      %p71 = scmp.eq.s32.totalorder %s19, 0
      %p72 = por %p70, %p71
      %p73 = scmp.le.s32.totalorder 1, %s13
      %p74 = scmp.lt.s32.totalorder %s13, 5
      %p75 = pnand %p73, %p74
      %p76 = pneg %p75
      // Predicated region
      $region9: #{tpu_custom_call.1} parent=5 // pred_check
        _
      $region10: #{tpu_custom_call.1} parent=5 // pred_check_branch
        %78 = sbr.rel (%p75) target = $region12
      $region11: #{tpu_custom_call.1} parent=5 // pred_region
        %s79 = ssub.s32 %s13, 1
      $region12: #{tpu_custom_call.1} parent=5 // pred_fallthru
        _
      %p80 = scmp.lt.s32.totalorder %s13, 4
      // Predicated region
      $region13: #{tpu_custom_call.1} parent=5 // pred_check
        %p81 = pneg %p80
      $region14: #{tpu_custom_call.1} parent=5 // pred_check_branch
        %83 = sbr.rel (%p81) target = $region16
      $region15: #{tpu_custom_call.1} parent=5 // pred_region
        // Predicated region
        $region17: #{tpu_custom_call.1} parent=15 // pred_check
          %p84 = pneg %p33
        $region18: #{tpu_custom_call.1} parent=15 // pred_check_branch
          %86 = sbr.rel (%p84) target = $region20
        $region19: #{tpu_custom_call.1} parent=15 // pred_region
          %s87 = sand.u32 %s23, 1
          %s88 = scalar_lea.sflag [#allocation3], %s87
          %s89 = sand.u32 %s23, 1
          %s90 = smul.addr %s89, 256
          %s91 = scalar_lea.vmem [#allocation2], %s90
          %s93 = ssub.s32 4096, 4096
          %94 = vsyncadd %s88, %s93
          %s95 = smul.addr %s13, 32
          %s96 = smul.addr %s95, 128
          %s97 = scalar_lea.hbm %s0, %s96
          %s99 = sshll.u32 %s91, 4
          %s100 = int_to_ptr.vmem [resolvable:$true] %s99
          %102 = dma.hbm_to_vmem [thread:$0]  %s97, 4096, %s100, %s88
        $region20: #{tpu_custom_call.1} parent=15 // pred_fallthru
          _
      $region16: #{tpu_custom_call.1} parent=5 // pred_fallthru
        _
      %p103 = scmp.le.s32.totalorder 1, %s13
      %p104 = scmp.lt.s32.totalorder %s13, 5
      %p105 = pnand %p103, %p104
      %p106 = pneg %p105
      // Predicated region
      $region21: #{tpu_custom_call.1} parent=5 // pred_check
        _
      $region22: #{tpu_custom_call.1} parent=5 // pred_check_branch
        %108 = sbr.rel (%p105) target = $region24
      $region23: #{tpu_custom_call.1} parent=5 // pred_region
        %s109 = ssub.s32 %s13, 1
        %s110 = sand.u32 %s26, 1
        %s111 = scalar_lea.sflag [#allocation3], %s110
        %s112 = sand.u32 %s26, 1
        %s113 = smul.addr %s112, 256
        %s114 = scalar_lea.vmem [#allocation2], %s113
        // Predicated region
        $region25: #{tpu_custom_call.1} parent=23 // pred_check
          %p115 = pneg %p39
        $region26: #{tpu_custom_call.1} parent=23 // pred_check_branch
          %117 = sbr.rel (%p115) target = $region28
        $region27: #{tpu_custom_call.1} parent=23 // pred_region
          %118 = dma.done %s111, 4096
        $region28: #{tpu_custom_call.1} parent=23 // pred_fallthru
          _
        %s119 = sand.u32 %s26, 1
        %s120 = scalar_lea.sflag [#allocation3], %s119
        %s121 = sand.u32 %s26, 1
        %s122 = smul.addr %s121, 256
        %s123 = scalar_lea.vmem [#allocation2], %s122
        %p124 = pneg %p39
        %p125 = pneg %p36
        %p126 = pneg %p65
        %p127 = pneg %p62
        %s128 = sand.u32 %s52, 1
        %s129 = scalar_lea.sflag [#allocation4], %s128
        %s130 = sand.u32 %s52, 1
        %s131 = smul.addr %s130, 256
        %s132 = scalar_lea.vmem [#allocation5], %s131
        %v133 = vld [vmem:[%s114] sm:$0xff]
        %v134 = vld [vmem:[%s114 + $0x8] sm:$0xff]
        %v135 = vld [vmem:[%s114 + $0x10] sm:$0xff]
        %v136 = vld [vmem:[%s114 + $0x18] sm:$0xff]
        %v137 = vld [vmem:[%s114 + $0x20] sm:$0xff]
        %v138 = vld [vmem:[%s114 + $0x28] sm:$0xff]
        %v139 = vld [vmem:[%s114 + $0x30] sm:$0xff]
        %v140 = vld [vmem:[%s114 + $0x38] sm:$0xff]
        %v141 = vld [vmem:[%s114 + $0x40] sm:$0xff]
        %v142 = vld [vmem:[%s114 + $0x48] sm:$0xff]
        %v143 = vld [vmem:[%s114 + $0x50] sm:$0xff]
        %v144 = vld [vmem:[%s114 + $0x58] sm:$0xff]
        %v145 = vld [vmem:[%s114 + $0x60] sm:$0xff]
        %v146 = vld [vmem:[%s114 + $0x68] sm:$0xff]
        %v147 = vld [vmem:[%s114 + $0x70] sm:$0xff]
        %v148 = vld [vmem:[%s114 + $0x78] sm:$0xff]
        %v149 = vld [vmem:[%s114 + $0x80] sm:$0xff]
        %v150 = vld [vmem:[%s114 + $0x88] sm:$0xff]
        %v151 = vld [vmem:[%s114 + $0x90] sm:$0xff]
        %v152 = vld [vmem:[%s114 + $0x98] sm:$0xff]
        %v153 = vld [vmem:[%s114 + $0xa0] sm:$0xff]
        %v154 = vld [vmem:[%s114 + $0xa8] sm:$0xff]
        %v155 = vld [vmem:[%s114 + $0xb0] sm:$0xff]
        %v156 = vld [vmem:[%s114 + $0xb8] sm:$0xff]
        %v157 = vld [vmem:[%s114 + $0xc0] sm:$0xff]
        %v158 = vld [vmem:[%s114 + $0xc8] sm:$0xff]
        %v159 = vld [vmem:[%s114 + $0xd0] sm:$0xff]
        %v160 = vld [vmem:[%s114 + $0xd8] sm:$0xff]
        %v161 = vld [vmem:[%s114 + $0xe0] sm:$0xff]
        %v162 = vld [vmem:[%s114 + $0xe8] sm:$0xff]
        %v163 = vld [vmem:[%s114 + $0xf0] sm:$0xff]
        %v164 = vld [vmem:[%s114 + $0xf8] sm:$0xff]
        %v165 = vmul.f32 %v133, 0.5
        %v166 = vmul.f32 %v134, 0.5
        %v167 = vmul.f32 %v135, 0.5
        %v168 = vmul.f32 %v136, 0.5
        %v169 = vmul.f32 %v137, 0.5
        %v170 = vmul.f32 %v138, 0.5
        %v171 = vmul.f32 %v139, 0.5
        %v172 = vmul.f32 %v140, 0.5
        %v173 = vmul.f32 %v141, 0.5
        %v174 = vmul.f32 %v142, 0.5
        %v175 = vmul.f32 %v143, 0.5
        %v176 = vmul.f32 %v144, 0.5
        %v177 = vmul.f32 %v145, 0.5
        %v178 = vmul.f32 %v146, 0.5
        %v179 = vmul.f32 %v147, 0.5
        %v180 = vmul.f32 %v148, 0.5
        %v181 = vmul.f32 %v149, 0.5
        %v182 = vmul.f32 %v150, 0.5
        %v183 = vmul.f32 %v151, 0.5
        %v184 = vmul.f32 %v152, 0.5
        %v185 = vmul.f32 %v153, 0.5
        %v186 = vmul.f32 %v154, 0.5
        %v187 = vmul.f32 %v155, 0.5
        %v188 = vmul.f32 %v156, 0.5
        %v189 = vmul.f32 %v157, 0.5
        %v190 = vmul.f32 %v158, 0.5
        %v191 = vmul.f32 %v159, 0.5
        %v192 = vmul.f32 %v160, 0.5
        %v193 = vmul.f32 %v161, 0.5
        %v194 = vmul.f32 %v162, 0.5
        %v195 = vmul.f32 %v163, 0.5
        %v196 = vmul.f32 %v164, 0.5
        %v197 = vtanh.pop %v165
        %v198 = vtanh.pop %v166
        %v199 = vtanh.pop %v167
        %v200 = vtanh.pop %v168
        %v201 = vtanh.pop %v169
        %v202 = vtanh.pop %v170
        %v203 = vtanh.pop %v171
        %v204 = vtanh.pop %v172
        %v205 = vtanh.pop %v173
        %v206 = vtanh.pop %v174
        %v207 = vtanh.pop %v175
        %v208 = vtanh.pop %v176
        %v209 = vtanh.pop %v177
        %v210 = vtanh.pop %v178
        %v211 = vtanh.pop %v179
        %v212 = vtanh.pop %v180
        %v213 = vtanh.pop %v181
        %v214 = vtanh.pop %v182
        %v215 = vtanh.pop %v183
        %v216 = vtanh.pop %v184
        %v217 = vtanh.pop %v185
        %v218 = vtanh.pop %v186
        %v219 = vtanh.pop %v187
        %v220 = vtanh.pop %v188
        %v221 = vtanh.pop %v189
        %v222 = vtanh.pop %v190
        %v223 = vtanh.pop %v191
        %v224 = vtanh.pop %v192
        %v225 = vtanh.pop %v193
        %v226 = vtanh.pop %v194
        %v227 = vtanh.pop %v195
        %v228 = vtanh.pop %v196
        %v229 = vmul.f32 %v197, 0.5
        %v230 = vmul.f32 %v198, 0.5
        %v231 = vmul.f32 %v199, 0.5
        %v232 = vmul.f32 %v200, 0.5
        %v233 = vmul.f32 %v201, 0.5
        %v234 = vmul.f32 %v202, 0.5
        %v235 = vmul.f32 %v203, 0.5
        %v236 = vmul.f32 %v204, 0.5
        %v237 = vmul.f32 %v205, 0.5
        %v238 = vmul.f32 %v206, 0.5
        %v239 = vmul.f32 %v207, 0.5
        %v240 = vmul.f32 %v208, 0.5
        %v241 = vmul.f32 %v209, 0.5
        %v242 = vmul.f32 %v210, 0.5
        %v243 = vmul.f32 %v211, 0.5
        %v244 = vmul.f32 %v212, 0.5
        %v245 = vmul.f32 %v213, 0.5
        %v246 = vmul.f32 %v214, 0.5
        %v247 = vmul.f32 %v215, 0.5
        %v248 = vmul.f32 %v216, 0.5
        %v249 = vmul.f32 %v217, 0.5
        %v250 = vmul.f32 %v218, 0.5
        %v251 = vmul.f32 %v219, 0.5
        %v252 = vmul.f32 %v220, 0.5
        %v253 = vmul.f32 %v221, 0.5
        %v254 = vmul.f32 %v222, 0.5
        %v255 = vmul.f32 %v223, 0.5
        %v256 = vmul.f32 %v224, 0.5
        %v257 = vmul.f32 %v225, 0.5
        %v258 = vmul.f32 %v226, 0.5
        %v259 = vmul.f32 %v227, 0.5
        %v260 = vmul.f32 %v228, 0.5
        %v261 = vadd.f32 %v229, 0.5
        %v262 = vadd.f32 %v230, 0.5
        %v263 = vadd.f32 %v231, 0.5
        %v264 = vadd.f32 %v232, 0.5
        %v265 = vadd.f32 %v233, 0.5
        %v266 = vadd.f32 %v234, 0.5
        %v267 = vadd.f32 %v235, 0.5
        %v268 = vadd.f32 %v236, 0.5
        %v269 = vadd.f32 %v237, 0.5
        %v270 = vadd.f32 %v238, 0.5
        %v271 = vadd.f32 %v239, 0.5
        %v272 = vadd.f32 %v240, 0.5
        %v273 = vadd.f32 %v241, 0.5
        %v274 = vadd.f32 %v242, 0.5
        %v275 = vadd.f32 %v243, 0.5
        %v276 = vadd.f32 %v244, 0.5
        %v277 = vadd.f32 %v245, 0.5
        %v278 = vadd.f32 %v246, 0.5
        %v279 = vadd.f32 %v247, 0.5
        %v280 = vadd.f32 %v248, 0.5
        %v281 = vadd.f32 %v249, 0.5
        %v282 = vadd.f32 %v250, 0.5
        %v283 = vadd.f32 %v251, 0.5
        %v284 = vadd.f32 %v252, 0.5
        %v285 = vadd.f32 %v253, 0.5
        %v286 = vadd.f32 %v254, 0.5
        %v287 = vadd.f32 %v255, 0.5
        %v288 = vadd.f32 %v256, 0.5
        %v289 = vadd.f32 %v257, 0.5
        %v290 = vadd.f32 %v258, 0.5
        %v291 = vadd.f32 %v259, 0.5
        %v292 = vadd.f32 %v260, 0.5
        %v293 = vadd.f32 %v261, 0.0
        %v294 = vadd.f32 %v262, 0.0
        %v295 = vadd.f32 %v263, 0.0
        %v296 = vadd.f32 %v264, 0.0
        %v297 = vadd.f32 %v265, 0.0
        %v298 = vadd.f32 %v266, 0.0
        %v299 = vadd.f32 %v267, 0.0
        %v300 = vadd.f32 %v268, 0.0
        %v301 = vadd.f32 %v269, 0.0
        %v302 = vadd.f32 %v270, 0.0
        %v303 = vadd.f32 %v271, 0.0
        %v304 = vadd.f32 %v272, 0.0
        %v305 = vadd.f32 %v273, 0.0
        %v306 = vadd.f32 %v274, 0.0
        %v307 = vadd.f32 %v275, 0.0
        %v308 = vadd.f32 %v276, 0.0
        %v309 = vadd.f32 %v277, 0.0
        %v310 = vadd.f32 %v278, 0.0
        %v311 = vadd.f32 %v279, 0.0
        %v312 = vadd.f32 %v280, 0.0
        %v313 = vadd.f32 %v281, 0.0
        %v314 = vadd.f32 %v282, 0.0
        %v315 = vadd.f32 %v283, 0.0
        %v316 = vadd.f32 %v284, 0.0
        %v317 = vadd.f32 %v285, 0.0
        %v318 = vadd.f32 %v286, 0.0
        %v319 = vadd.f32 %v287, 0.0
        %v320 = vadd.f32 %v288, 0.0
        %v321 = vadd.f32 %v289, 0.0
        %v322 = vadd.f32 %v290, 0.0
        %v323 = vadd.f32 %v291, 0.0
        %v324 = vadd.f32 %v292, 0.0
        %v325 = vmax.f32 %v293, 1e-05
        %v326 = vmax.f32 %v294, 1e-05
        %v327 = vmax.f32 %v295, 1e-05
        %v328 = vmax.f32 %v296, 1e-05
        %v329 = vmax.f32 %v297, 1e-05
        %v330 = vmax.f32 %v298, 1e-05
        %v331 = vmax.f32 %v299, 1e-05
        %v332 = vmax.f32 %v300, 1e-05
        %v333 = vmax.f32 %v301, 1e-05
        %v334 = vmax.f32 %v302, 1e-05
        %v335 = vmax.f32 %v303, 1e-05
        %v336 = vmax.f32 %v304, 1e-05
        %v337 = vmax.f32 %v305, 1e-05
        %v338 = vmax.f32 %v306, 1e-05
        %v339 = vmax.f32 %v307, 1e-05
        %v340 = vmax.f32 %v308, 1e-05
        %v341 = vmax.f32 %v309, 1e-05
        %v342 = vmax.f32 %v310, 1e-05
        %v343 = vmax.f32 %v311, 1e-05
        %v344 = vmax.f32 %v312, 1e-05
        %v345 = vmax.f32 %v313, 1e-05
        %v346 = vmax.f32 %v314, 1e-05
        %v347 = vmax.f32 %v315, 1e-05
        %v348 = vmax.f32 %v316, 1e-05
        %v349 = vmax.f32 %v317, 1e-05
        %v350 = vmax.f32 %v318, 1e-05
        %v351 = vmax.f32 %v319, 1e-05
        %v352 = vmax.f32 %v320, 1e-05
        %v353 = vmax.f32 %v321, 1e-05
        %v354 = vmax.f32 %v322, 1e-05
        %v355 = vmax.f32 %v323, 1e-05
        %v356 = vmax.f32 %v324, 1e-05
        %v357 = vmin.f32 %v325, 0.99999
        %v358 = vmin.f32 %v326, 0.99999
        %v359 = vmin.f32 %v327, 0.99999
        %v360 = vmin.f32 %v328, 0.99999
        %v361 = vmin.f32 %v329, 0.99999
        %v362 = vmin.f32 %v330, 0.99999
        %v363 = vmin.f32 %v331, 0.99999
        %v364 = vmin.f32 %v332, 0.99999
        %v365 = vmin.f32 %v333, 0.99999
        %v366 = vmin.f32 %v334, 0.99999
        %v367 = vmin.f32 %v335, 0.99999
        %v368 = vmin.f32 %v336, 0.99999
        %v369 = vmin.f32 %v337, 0.99999
        %v370 = vmin.f32 %v338, 0.99999
        %v371 = vmin.f32 %v339, 0.99999
        %v372 = vmin.f32 %v340, 0.99999
        %v373 = vmin.f32 %v341, 0.99999
        %v374 = vmin.f32 %v342, 0.99999
        %v375 = vmin.f32 %v343, 0.99999
        %v376 = vmin.f32 %v344, 0.99999
        %v377 = vmin.f32 %v345, 0.99999
        %v378 = vmin.f32 %v346, 0.99999
        %v379 = vmin.f32 %v347, 0.99999
        %v380 = vmin.f32 %v348, 0.99999
        %v381 = vmin.f32 %v349, 0.99999
        %v382 = vmin.f32 %v350, 0.99999
        %v383 = vmin.f32 %v351, 0.99999
        %v384 = vmin.f32 %v352, 0.99999
        %v385 = vmin.f32 %v353, 0.99999
        %v386 = vmin.f32 %v354, 0.99999
        %v387 = vmin.f32 %v355, 0.99999
        %v388 = vmin.f32 %v356, 0.99999
        %389 = vst [vmem:[%s132] sm:$0xff] %v357
        %390 = vst [vmem:[%s132 + $0x8] sm:$0xff] %v358
        %391 = vst [vmem:[%s132 + $0x10] sm:$0xff] %v359
        %392 = vst [vmem:[%s132 + $0x18] sm:$0xff] %v360
        %393 = vst [vmem:[%s132 + $0x20] sm:$0xff] %v361
        %394 = vst [vmem:[%s132 + $0x28] sm:$0xff] %v362
        %395 = vst [vmem:[%s132 + $0x30] sm:$0xff] %v363
        %396 = vst [vmem:[%s132 + $0x38] sm:$0xff] %v364
        %397 = vst [vmem:[%s132 + $0x40] sm:$0xff] %v365
        %398 = vst [vmem:[%s132 + $0x48] sm:$0xff] %v366
        %399 = vst [vmem:[%s132 + $0x50] sm:$0xff] %v367
        %400 = vst [vmem:[%s132 + $0x58] sm:$0xff] %v368
        %401 = vst [vmem:[%s132 + $0x60] sm:$0xff] %v369
        %402 = vst [vmem:[%s132 + $0x68] sm:$0xff] %v370
        %403 = vst [vmem:[%s132 + $0x70] sm:$0xff] %v371
        %404 = vst [vmem:[%s132 + $0x78] sm:$0xff] %v372
        %405 = vst [vmem:[%s132 + $0x80] sm:$0xff] %v373
        %406 = vst [vmem:[%s132 + $0x88] sm:$0xff] %v374
        %407 = vst [vmem:[%s132 + $0x90] sm:$0xff] %v375
        %408 = vst [vmem:[%s132 + $0x98] sm:$0xff] %v376
        %409 = vst [vmem:[%s132 + $0xa0] sm:$0xff] %v377
        %410 = vst [vmem:[%s132 + $0xa8] sm:$0xff] %v378
        %411 = vst [vmem:[%s132 + $0xb0] sm:$0xff] %v379
        %412 = vst [vmem:[%s132 + $0xb8] sm:$0xff] %v380
        %413 = vst [vmem:[%s132 + $0xc0] sm:$0xff] %v381
        %414 = vst [vmem:[%s132 + $0xc8] sm:$0xff] %v382
        %415 = vst [vmem:[%s132 + $0xd0] sm:$0xff] %v383
        %416 = vst [vmem:[%s132 + $0xd8] sm:$0xff] %v384
        %417 = vst [vmem:[%s132 + $0xe0] sm:$0xff] %v385
        %418 = vst [vmem:[%s132 + $0xe8] sm:$0xff] %v386
        %419 = vst [vmem:[%s132 + $0xf0] sm:$0xff] %v387
        %420 = vst [vmem:[%s132 + $0xf8] sm:$0xff] %v388
        %s421 = sand.u32 %s52, 1
        %s422 = scalar_lea.sflag [#allocation4], %s421
        %s423 = sand.u32 %s52, 1
        %s424 = smul.addr %s423, 256
        %s425 = scalar_lea.vmem [#allocation5], %s424
        // Predicated region
        $region29: #{tpu_custom_call.1} parent=23 // pred_check
          %p426 = pneg %p62
        $region30: #{tpu_custom_call.1} parent=23 // pred_check_branch
          %428 = sbr.rel (%p426) target = $region32
        $region31: #{tpu_custom_call.1} parent=23 // pred_region
          %s430 = ssub.s32 4096, 4096
          %431 = vsyncadd %s422, %s430
          %s432 = smul.addr %s18, 32
          %s433 = smul.addr %s432, 128
          %s434 = scalar_lea.hbm %s1, %s433
          %s436 = sshll.u32 %s425, 4
          %s437 = int_to_ptr.vmem [resolvable:$true] %s436
          %439 = dma.vmem_to_hbm [thread:$0]  %s437, 4096, %s434, %s422
        $region32: #{tpu_custom_call.1} parent=23 // pred_fallthru
          _
      $region24: #{tpu_custom_call.1} parent=5 // pred_fallthru
        _
      %p440 = scmp.le.s32.totalorder 2, %s13
      // Predicated region
      $region33: #{tpu_custom_call.1} parent=5 // pred_check
        %p441 = pneg %p440
      $region34: #{tpu_custom_call.1} parent=5 // pred_check_branch
        %443 = sbr.rel (%p441) target = $region36
      $region35: #{tpu_custom_call.1} parent=5 // pred_region
        %s444 = ssub.s32 %s13, 2
        // Predicated region
        $region37: #{tpu_custom_call.1} parent=35 // pred_check
          %p445 = pneg %p68
        $region38: #{tpu_custom_call.1} parent=35 // pred_check_branch
          %447 = sbr.rel (%p445) target = $region40
        $region39: #{tpu_custom_call.1} parent=35 // pred_region
          %s448 = sand.u32 %s53, 1
          %s449 = scalar_lea.sflag [#allocation4], %s448
          %s450 = sand.u32 %s53, 1
          %s451 = smul.addr %s450, 256
          %s452 = scalar_lea.vmem [#allocation5], %s451
          %453 = dma.done %s449, 4096
        $region40: #{tpu_custom_call.1} parent=35 // pred_fallthru
          _
      $region36: #{tpu_custom_call.1} parent=5 // pred_fallthru
        _
    $region6: #{tpu_custom_call.1} parent=1 // loop_footer
      %s17 = sadd.s32 1, %s13
    $region7: #{tpu_custom_call.1} parent=1 // loop_footer_branch
      %12 = sbr.rel target = $region3
    $region8: #{tpu_custom_call.1} parent=1 // loop_exit
      _
    %454 = vsyncpa [#allocation3], 1
    %s455 = scalar_lea.sflag [#allocation3], 1
    %456 = vsyncpa %s455, 1
    %457 = vsyncpa [#allocation4], 1
    %s458 = scalar_lea.sflag [#allocation4], 1
    %459 = vsyncpa %s458, 1

</llo_original>
